<compile_context>
chip_gen: v5e
topology: v5e:2x2
jax: 0.10.0
libtpu: 0.0.40
codegen_flags: <defaults>
</compile_context>

<pallas_src>
import math

import jax
import jax.numpy as jnp
from jax.experimental import pallas as pl
from jax.experimental.pallas import tpu as pltpu


_LANE = 128
_SUBLANE = 8
_VMEM_BUDGET = 24 * 1024 * 1024      # target working set (inputs dbl-buffered + weights)
_VMEM_LIMIT = 32 * 1024 * 1024       # scoped VMEM limit; <= physical on v5e/v6e/v7x


# ----------------------------- helpers --------------------------------------


def _round_up(x: int, m: int) -> int:
    return ((x + m - 1) // m) * m


def _pad2d(x: jax.Array, rows: int, cols: int) -> jax.Array:
    r, c = x.shape
    if r == rows and c == cols:
        return x
    return jnp.pad(x, ((0, rows - r), (0, cols - c)))


def _pick_tile_b(batch: int, d_pad: int, itemsize: int) -> int:
    """Largest batch tile (multiple of 8, <=1024) whose double-buffered
    emb1/emb2 blocks fit the VMEM budget."""
    per_row = 4 * d_pad * itemsize + 2 * 4   # 2 inputs x 2 buffers + (tile,1) out
    tile_b = _VMEM_BUDGET // per_row
    tile_b = int(min(tile_b, 1024, _round_up(batch, _SUBLANE)))
    return max(_SUBLANE, (tile_b // _SUBLANE) * _SUBLANE)


def _pick_bilinear_tiles(batch: int, d_pad: int, itemsize: int):
    """(tile_b, tile_k) for the K-tiled bilinear contraction."""
    if d_pad <= 512:
        tile_k = d_pad
    elif d_pad % 512 == 0:
        tile_k = 512
    elif d_pad % 256 == 0:
        tile_k = 256
    else:
        tile_k = 128
    w_bytes = d_pad * tile_k * 4 * (2 if tile_k < d_pad else 1)
    budget = max(_VMEM_BUDGET - w_bytes, 2 * 1024 * 1024)
    per_row = (2 * d_pad + 2 * tile_k) * itemsize + 12   # e1 + e2 dbuf + out/acc
    tile_b = int(min(budget // per_row, 1024, _round_up(batch, _SUBLANE)))
    tile_b = max(_SUBLANE, (tile_b // _SUBLANE) * _SUBLANE)
    return tile_b, tile_k


def _compiler_params(dimension_semantics):
    return pltpu.CompilerParams(
        dimension_semantics=dimension_semantics,
        vmem_limit_bytes=_VMEM_LIMIT,
    )


_SMEM_SPEC = pl.BlockSpec(memory_space=pltpu.MemorySpace.SMEM)


# ----------------------------- kernels --------------------------------------


def _linear_kernel(e1_ref, e2_ref, w1_ref, w2_ref, b_ref, o_ref):
    # e1,e2: (TILE_B, D)  streamed;  w1,w2: (1, D) VMEM-resident rows;
    # b: (1,1) SMEM scalar;  o: (TILE_B, 1)
    e1 = e1_ref[...].astype(jnp.float32)
    e2 = e2_ref[...].astype(jnp.float32)
    w1 = w1_ref[...].astype(jnp.float32)   # broadcast over sublanes
    w2 = w2_ref[...].astype(jnp.float32)
    # VPU multiply + lane reduction instead of an N=1 MXU matmul.
    s = jnp.sum(e1 * w1 + e2 * w2, axis=1, keepdims=True)
    o_ref[...] = (s + b_ref[0, 0]).astype(o_ref.dtype)


def _bilinear_kernel(e1_ref, e2_ref, w_ref, b_ref, o_ref, acc_ref):
    # e1: (TILE_B, D) resident across K;  e2: (TILE_B, TILE_K);
    # w: (D, TILE_K) column panel;  b: (1,1) SMEM;  acc: (TILE_B, 1) f32 scratch
    k = pl.program_id(1)

    @pl.when(k == 0)
    def _():
        acc_ref[...] = jnp.zeros_like(acc_ref)

    t = jnp.dot(
        e1_ref[...].astype(w_ref.dtype), w_ref[...],
        preferred_element_type=jnp.float32,
    )  # (TILE_B, TILE_K)
    acc_ref[...] += jnp.sum(
        t * e2_ref[...].astype(jnp.float32), axis=1, keepdims=True
    )

    @pl.when(k == pl.num_programs(1) - 1)
    def _():
        o_ref[...] = (acc_ref[...] + b_ref[0, 0]).astype(o_ref.dtype)


def _cosine_kernel(e1_ref, e2_ref, o_ref):
    # e1,e2: (TILE_B, D);  o: (TILE_B, 1)
    e1 = e1_ref[...].astype(jnp.float32)
    e2 = e2_ref[...].astype(jnp.float32)
    dot = jnp.sum(e1 * e2, axis=1, keepdims=True)
    n1sq = jnp.sum(e1 * e1, axis=1, keepdims=True)
    n2sq = jnp.sum(e2 * e2, axis=1, keepdims=True)
    # torch CosineSimilarity: dot / max(||a||*||b||, eps).  sqrt -> EUP slot.
    denom = jnp.maximum(jnp.sqrt(n1sq * n2sq), jnp.float32(1e-8))
    o_ref[...] = (dot / denom).astype(o_ref.dtype)


# ----------------------------- module ---------------------------------------


class EntityScorePallas:
    """JAX/Pallas re-implementation of EntityScore's forward pass."""

    def __init__(self, score_method: str, emb_dim: int, key) -> None:
        self.score_method = score_method
        self.emb_dim = emb_dim
        self.d_pad = _round_up(emb_dim, _LANE)
        k1, k2 = jax.random.split(key)

        if score_method == "linear":
            # torch nn.Linear(2D, 1): weight (1, 2D), bias (1,)
            bound = 1.0 / math.sqrt(2.0 * emb_dim)
            w = jax.random.uniform(k1, (1, 2 * emb_dim), jnp.float32, -bound, bound)
            b = jax.random.uniform(k2, (1,), jnp.float32, -bound, bound)
            # keep weights as lane-dense (1, D_pad) rows (zero-padded)
            self.w1 = _pad2d(w[:, :emb_dim], 1, self.d_pad)
            self.w2 = _pad2d(w[:, emb_dim:], 1, self.d_pad)
            self.b = b.reshape(1, 1)
        elif score_method == "bilinear":
            # torch nn.Bilinear(D, D, 1): weight (1, D, D), bias (1,)
            bound = 1.0 / math.sqrt(float(emb_dim))
            w = jax.random.uniform(
                k1, (1, emb_dim, emb_dim), jnp.float32, -bound, bound
            )
            b = jax.random.uniform(k2, (1,), jnp.float32, -bound, bound)
            self.w = _pad2d(w[0], self.d_pad, self.d_pad)  # (D_pad, D_pad)
            self.b = b.reshape(1, 1)
        elif score_method == "cosine":
            pass
        else:
            raise ValueError(f"unknown score_method: {score_method}")

    # -- forward --------------------------------------------------------------

    def __call__(self, emb1: jax.Array, emb2: jax.Array) -> jax.Array:
        assert emb1.shape == emb2.shape and emb1.shape[1] == self.emb_dim
        B, D = emb1.shape
        d_pad = self.d_pad
        itemsize = jnp.dtype(emb1.dtype).itemsize

        if self.score_method == "bilinear":
            return self._bilinear(emb1, emb2, B, D, d_pad, itemsize)

        tile_b = _pick_tile_b(B, d_pad, itemsize)
        b_pad = _round_up(B, tile_b)
        e1 = _pad2d(emb1, b_pad, d_pad)
        e2 = _pad2d(emb2, b_pad, d_pad)
        grid = (b_pad // tile_b,)
        emb_spec = pl.BlockSpec((tile_b, d_pad), lambda i: (i, 0))
        out_spec = pl.BlockSpec((tile_b, 1), lambda i: (i, 0))
        out_shape = jax.ShapeDtypeStruct((b_pad, 1), jnp.float32)

        if self.score_method == "linear":
            row_spec = pl.BlockSpec((1, d_pad), lambda i: (0, 0))  # resident
            out = pl.pallas_call(
                _linear_kernel,
                out_shape=out_shape,
                grid=grid,
                in_specs=[emb_spec, emb_spec, row_spec, row_spec, _SMEM_SPEC],
                out_specs=out_spec,
                compiler_params=_compiler_params(("parallel",)),
                cost_estimate=pl.CostEstimate(
                    flops=4 * B * D,
                    transcendentals=0,
                    bytes_accessed=(2 * b_pad * d_pad + 2 * d_pad + b_pad) * itemsize,
                ),
            )(e1, e2, self.w1, self.w2, self.b)
            return out[:B]

        # cosine: torch CosineSimilarity(dim=1) returns shape (B,)
        out = pl.pallas_call(
            _cosine_kernel,
            out_shape=out_shape,
            grid=grid,
            in_specs=[emb_spec, emb_spec],
            out_specs=out_spec,
            compiler_params=_compiler_params(("parallel",)),
            cost_estimate=pl.CostEstimate(
                flops=6 * B * D,
                transcendentals=B,
                bytes_accessed=(2 * b_pad * d_pad + b_pad) * itemsize,
            ),
        )(e1, e2)
        return out[:B, 0]

    def _bilinear(self, emb1, emb2, B, D, d_pad, itemsize):
        tile_b, tile_k = _pick_bilinear_tiles(B, d_pad, itemsize)
        k_tiles = d_pad // tile_k
        b_pad = _round_up(B, tile_b)
        e1 = _pad2d(emb1, b_pad, d_pad)
        e2 = _pad2d(emb2, b_pad, d_pad)

        out = pl.pallas_call(
            _bilinear_kernel,
            out_shape=jax.ShapeDtypeStruct((b_pad, 1), jnp.float32),
            grid=(b_pad // tile_b, k_tiles),
            in_specs=[
                pl.BlockSpec((tile_b, d_pad), lambda i, k: (i, 0)),   # e1 (resident over k)
                pl.BlockSpec((tile_b, tile_k), lambda i, k: (i, k)),  # e2 panel
                pl.BlockSpec((d_pad, tile_k), lambda i, k: (0, k)),   # W column panel
                _SMEM_SPEC,                                           # bias scalar
            ],
            out_specs=pl.BlockSpec((tile_b, 1), lambda i, k: (i, 0)),
            scratch_shapes=[pltpu.VMEM((tile_b, 1), jnp.float32)],
            compiler_params=_compiler_params(("parallel", "arbitrary")),
            cost_estimate=pl.CostEstimate(
                flops=2 * B * D * D + 2 * B * D,
                transcendentals=0,
                bytes_accessed=(2 * b_pad * d_pad + d_pad * d_pad) * itemsize
                + b_pad * 4,
            ),
        )(e1, e2, self.w, self.b)
        return out[:B]


# ----------------------------- reference (pure JAX) --------------------------


def _reference(model: EntityScorePallas, emb1, emb2):
    D = model.emb_dim
    if model.score_method == "linear":
        w1 = model.w1[0, :D][:, None]
        w2 = model.w2[0, :D][:, None]
        return emb1 @ w1 + emb2 @ w2 + model.b
    if model.score_method == "bilinear":
        w = model.w[:D, :D]
        return jnp.sum((emb1 @ w) * emb2, axis=1, keepdims=True) + model.b
    dot = jnp.sum(emb1 * emb2, axis=1)
    n1 = jnp.linalg.norm(emb1, axis=1)
    n2 = jnp.linalg.norm(emb2, axis=1)
    return dot / jnp.maximum(n1 * n2, 1e-8)


# ----------------------------- main -----------------------------------------

if __name__ == "__main__":
    key = jax.random.PRNGKey(0)
    k_e1, k_e2, k_lin, k_bil = jax.random.split(key, 4)

    B, D = 8, 32
    emb1 = jax.random.normal(k_e1, (B, D), jnp.float32)
    emb2 = jax.random.normal(k_e2, (B, D), jnp.float32)

    ok = True
    for method, k in (("linear", k_lin), ("bilinear", k_bil), ("cosine", k_lin)):
        model = EntityScorePallas(method, D, k)
        out = jax.block_until_ready(model(emb1, emb2))
        ref = _reference(model, emb1, emb2)
        if out.shape != ref.shape or not jnp.allclose(out, ref, atol=1e-5, rtol=1e-5):
            ok = False
            print(f"mismatch for {method}: {out.shape} vs {ref.shape}")

    if ok:
        print("KERNEL_OK")
</pallas_src>

<mosaic_0001>
module attributes {stable_mosaic.version = 11 : i64} {
  func.func @_linear_kernel(%arg0: i32, %arg1: memref<8x128xf32, #tpu.memory_space<vmem>>, %arg2: memref<8x128xf32, #tpu.memory_space<vmem>>, %arg3: memref<1x128xf32, #tpu.memory_space<vmem>>, %arg4: memref<1x128xf32, #tpu.memory_space<vmem>>, %arg5: memref<1x1xf32, #tpu.memory_space<smem>>, %arg6: memref<8x1xf32, #tpu.memory_space<vmem>>) attributes {dimension_semantics = [#tpu.dimension_semantics<parallel>], iteration_bounds = array<i64: 1>, scalar_prefetch = 0 : i64, scratch_operands = 0 : i64, tpu.core_type = #tpu.core_type<tc>, window_params = [{transform_indices = @transform_0, window_bounds = array<i64: 8, 128>}, {transform_indices = @transform_1, window_bounds = array<i64: 8, 128>}, {pipeline_mode = #tpu.pipeline_mode<synchronous>, transform_indices = @transform_2, window_bounds = array<i64: 1, 128>}, {pipeline_mode = #tpu.pipeline_mode<synchronous>, transform_indices = @transform_3, window_bounds = array<i64: 1, 128>}, {transform_indices = @transform_4, window_bounds = array<i64: 1, 1>}, {transform_indices = @transform_5, window_bounds = array<i64: 8, 1>}]} {
    %c0 = arith.constant 0 : index
    %c0_0 = arith.constant 0 : index
    %0 = vector.load %arg1[%c0, %c0_0] : memref<8x128xf32, #tpu.memory_space<vmem>>, vector<8x128xf32>
    %c0_1 = arith.constant 0 : index
    %c0_2 = arith.constant 0 : index
    %1 = vector.load %arg2[%c0_1, %c0_2] : memref<8x128xf32, #tpu.memory_space<vmem>>, vector<8x128xf32>
    %c0_3 = arith.constant 0 : index
    %c0_4 = arith.constant 0 : index
    %2 = vector.load %arg3[%c0_3, %c0_4] : memref<1x128xf32, #tpu.memory_space<vmem>>, vector<1x128xf32>
    %c0_5 = arith.constant 0 : index
    %c0_6 = arith.constant 0 : index
    %3 = vector.load %arg4[%c0_5, %c0_6] : memref<1x128xf32, #tpu.memory_space<vmem>>, vector<1x128xf32>
    %4 = vector.broadcast %2 : vector<1x128xf32> to vector<8x128xf32>
    %5 = arith.mulf %0, %4 : vector<8x128xf32>
    %6 = vector.broadcast %3 : vector<1x128xf32> to vector<8x128xf32>
    %7 = arith.mulf %1, %6 : vector<8x128xf32>
    %8 = arith.addf %5, %7 : vector<8x128xf32>
    %cst = arith.constant dense<0.000000e+00> : vector<8xf32>
    %9 = vector.multi_reduction <add>, %8, %cst [1] : vector<8x128xf32> to vector<8xf32>
    %10 = vector.shape_cast %9 : vector<8xf32> to vector<8x1xf32>
    %c0_7 = arith.constant 0 : index
    %c0_8 = arith.constant 0 : index
    %11 = memref.load %arg5[%c0_7, %c0_8] : memref<1x1xf32, #tpu.memory_space<smem>>
    %12 = vector.broadcast %11 : f32 to vector<8x1xf32>
    %13 = arith.addf %10, %12 : vector<8x1xf32>
    %c0_9 = arith.constant 0 : index
    %c0_10 = arith.constant 0 : index
    %14 = vector.load %arg6[%c0_9, %c0_10] : memref<8x1xf32, #tpu.memory_space<vmem>>, vector<8x1xf32>
    tpu.vector_store %arg6[%c0_9, %c0_10], %13 {strides = array<i32>} : memref<8x1xf32, #tpu.memory_space<vmem>>, vector<8x1xf32>,
    return
  }
  func.func @transform_0(%arg0: i32) -> (i32, i32) {
    %c0_i32 = arith.constant 0 : i32
    %c0_i32_0 = arith.constant 0 : i32
    return %arg0, %c0_i32 : i32, i32
  }
  func.func @transform_1(%arg0: i32) -> (i32, i32) {
    %c0_i32 = arith.constant 0 : i32
    %c0_i32_0 = arith.constant 0 : i32
    return %arg0, %c0_i32 : i32, i32
  }
  func.func @transform_2(%arg0: i32) -> (i32, i32) {
    %c0_i32 = arith.constant 0 : i32
    %c0_i32_0 = arith.constant 0 : i32
    %c0_i32_1 = arith.constant 0 : i32
    return %c0_i32, %c0_i32_0 : i32, i32
  }
  func.func @transform_3(%arg0: i32) -> (i32, i32) {
    %c0_i32 = arith.constant 0 : i32
    %c0_i32_0 = arith.constant 0 : i32
    %c0_i32_1 = arith.constant 0 : i32
    return %c0_i32, %c0_i32_0 : i32, i32
  }
  func.func @transform_4(%arg0: i32) -> (i32, i32) {
    %c0_i32 = arith.constant 0 : i32
    %c0_i32_0 = arith.constant 0 : i32
    %c0_i32_1 = arith.constant 0 : i32
    return %c0_i32, %c0_i32_0 : i32, i32
  }
  func.func @transform_5(%arg0: i32) -> (i32, i32) {
    %c0_i32 = arith.constant 0 : i32
    %c0_i32_0 = arith.constant 0 : i32
    return %arg0, %c0_i32 : i32, i32
  }
}

</mosaic_0001>

<llo_original>
// kernel: tpu_custom_call.1
$region0: #{tpu_custom_call.1}
  #allocation0 [shape = 'u32[]', space=smem, size = 0x4, offset = 0x4, fixed_abs, tag = 'smem constant byte address 0x4 - core index']
  #allocation1 [shape = 'u32[72,128]{1,0:T(1,128)}', space=vmem, size = 0x9000, scoped, tag = 'internal scratch']
  #allocation2 [shape = 'f32[1,1]{1,0:T(1,128)S(6)}', space=smem, size = 0x200, scoped, tag = 'scoped memory for tpu_custom_call.1']
  %s0 = inlined_call_operand.hbm [shape: f32[8,128], index: 0, kind: input, shape index: {}]
  %s1 = inlined_call_operand.hbm [shape: f32[8,128], index: 1, kind: input, shape index: {}]
  %s2 = inlined_call_operand.vmem [shape: f32[1,128], index: 2, kind: input, shape index: {}]
  %s3 = inlined_call_operand.vmem [shape: f32[1,128], index: 3, kind: input, shape index: {}]
  %s4 = inlined_call_operand.<no memory space> [shape: f32[1,1], index: 4, kind: input, shape index: {}]
  %s5 = inlined_call_operand.vmem [shape: f32[8,1], index: 5, kind: output, shape index: {}]
  %s6 = sld [smem:[#allocation0]]
  $region38: #{tpu_custom_call.1} parent=0
    _
  %s8 = ssub.s32 1, %s6
  %s9 = scalar_select 0, %s8, %s6
  %10 = sst [smem:[#allocation2]] %s4
  $region1: #{tpu_custom_call.1} parent=0
    #allocation3 [shape = 'u8[4096]{0}', space=vmem, size = 0x1000, scoped, tag = 'input window, operand 0, single buffered']
    #allocation4 [shape = 's32[1]{0}', space=sflag, size = 0x4, scoped, tag = 'scoped memory for tpu_custom_call.1']
    #allocation5 [shape = 'u8[4096]{0}', space=vmem, size = 0x1000, scoped, tag = 'input window, operand 1, single buffered']
    #allocation6 [shape = 's32[1]{0}', space=sflag, size = 0x4, scoped, tag = 'scoped memory for tpu_custom_call.1']
    %11 = vsyncpa [#allocation4], 0
    %12 = vsyncpa [#allocation6], 0
    // Predicated region
    $region2: #{tpu_custom_call.1} parent=1 // pred_check
      _
    $region3: #{tpu_custom_call.1} parent=1 // pred_check_branch
      %14 = sbr.rel (0) target = $region5
    $region4: #{tpu_custom_call.1} parent=1 // pred_region
      %16 = vsyncadd [#allocation4], 0
      %s18 = sshll.u32 %s0, 4
      %s19 = int_to_ptr.hbm [resolvable:$true] %s18
      %s20 = sshll.u32 [#allocation3], 4
      %s21 = int_to_ptr.vmem [resolvable:$true] %s20
      %23 = dma.hbm_to_vmem [thread:$0]  %s19, 128, %s21, [#allocation4]
    $region5: #{tpu_custom_call.1} parent=1 // pred_fallthru
      _
    // Predicated region
    $region6: #{tpu_custom_call.1} parent=1 // pred_check
      _
    $region7: #{tpu_custom_call.1} parent=1 // pred_check_branch
      %25 = sbr.rel (0) target = $region9
    $region8: #{tpu_custom_call.1} parent=1 // pred_region
      %27 = vsyncadd [#allocation6], 0
      %s29 = sshll.u32 %s1, 4
      %s30 = int_to_ptr.hbm [resolvable:$true] %s29
      %s31 = sshll.u32 [#allocation5], 4
      %s32 = int_to_ptr.vmem [resolvable:$true] %s31
      %34 = dma.hbm_to_vmem [thread:$0]  %s30, 128, %s32, [#allocation6]
    $region9: #{tpu_custom_call.1} parent=1 // pred_fallthru
      _
    // Predicated region
    $region10: #{tpu_custom_call.1} parent=1 // pred_check
      _
    $region11: #{tpu_custom_call.1} parent=1 // pred_check_branch
      %36 = sbr.rel (0) target = $region13
    $region12: #{tpu_custom_call.1} parent=1 // pred_region
      _
    $region13: #{tpu_custom_call.1} parent=1 // pred_fallthru
      _
    // Predicated region
    $region14: #{tpu_custom_call.1} parent=1 // pred_check
      _
    $region15: #{tpu_custom_call.1} parent=1 // pred_check_branch
      %38 = sbr.rel (0) target = $region17
    $region16: #{tpu_custom_call.1} parent=1 // pred_region
      _
    $region17: #{tpu_custom_call.1} parent=1 // pred_fallthru
      _
    // Predicated region
    $region18: #{tpu_custom_call.1} parent=1 // pred_check
      _
    $region19: #{tpu_custom_call.1} parent=1 // pred_check_branch
      %40 = sbr.rel (0) target = $region21
    $region20: #{tpu_custom_call.1} parent=1 // pred_region
      _
    $region21: #{tpu_custom_call.1} parent=1 // pred_fallthru
      _
    // Predicated region
    $region22: #{tpu_custom_call.1} parent=1 // pred_check
      _
    $region23: #{tpu_custom_call.1} parent=1 // pred_check_branch
      %42 = sbr.rel (0) target = $region25
    $region24: #{tpu_custom_call.1} parent=1 // pred_region
      %44 = dma.done [#allocation4], 128
    $region25: #{tpu_custom_call.1} parent=1 // pred_fallthru
      _
    // Predicated region
    $region26: #{tpu_custom_call.1} parent=1 // pred_check
      _
    $region27: #{tpu_custom_call.1} parent=1 // pred_check_branch
      %46 = sbr.rel (0) target = $region29
    $region28: #{tpu_custom_call.1} parent=1 // pred_region
      %48 = dma.done [#allocation6], 128
    $region29: #{tpu_custom_call.1} parent=1 // pred_fallthru
      _
    %v49 = vld [vmem:[#allocation3] sm:$0xff]
    %v50 = vld [vmem:[#allocation5] sm:$0xff]
    %v51 = vld [vmem:[%s2] sm:$0x1]
    %v52 = vld [vmem:[%s3] sm:$0x1]
    %v54 = vperm.slane %v51, 0
    %v56 = vmul.f32 %v49, %v54
    %v58 = vperm.slane %v52, 0
    %v60 = vmul.f32 %v50, %v58
    %v61 = vadd.f32 %v56, %v60
    %62 = vadd.xlane.f32.xlu0 %v61
    %v63 = vpop.xlane.xlu0 %62
    %s64 = sld [smem:[#allocation2]]
    %v65 = vstv %s64
    %v66 = vadd.f32 %v63, %v65
    %vm67 = vcmask 7168
    %68 = vst.msk [vmem:[%s5] sm:$0xff] %vm67, %v66
    // Predicated region
    $region30: #{tpu_custom_call.1} parent=1 // pred_check
      _
    $region31: #{tpu_custom_call.1} parent=1 // pred_check_branch
      %70 = sbr.rel (0) target = $region33
    $region32: #{tpu_custom_call.1} parent=1 // pred_region
      _
    $region33: #{tpu_custom_call.1} parent=1 // pred_fallthru
      _
    // Predicated region
    $region34: #{tpu_custom_call.1} parent=1 // pred_check
      _
    $region35: #{tpu_custom_call.1} parent=1 // pred_check_branch
      %72 = sbr.rel (0) target = $region37
    $region36: #{tpu_custom_call.1} parent=1 // pred_region
      _
    $region37: #{tpu_custom_call.1} parent=1 // pred_fallthru
      _
    %73 = vsyncpa [#allocation4], 1
    %74 = vsyncpa [#allocation6], 1

</llo_original>
